<compile_context>
chip_gen: v6e
topology: v6e:2x2x1
jax: 0.10.0
libtpu: 0.0.40
codegen_flags: <defaults>
</compile_context>

<pallas_src>
import numpy as np
import jax
import jax.numpy as jnp
from jax.experimental import pallas as pl
from jax.experimental.pallas import tpu as pltpu

_LANE = 128
_SUBLANE = 8
# Total VMEM consumed by the double-buffered pipeline tiles (logits + targets
# + per-sample output).  24 MiB stays under the 32 MiB scoped default and well
# under v7x's 64 MiB physical VMEM while giving ~6 MiB logits tiles.
_VMEM_TILE_BUDGET = 24 * 1024 * 1024


def _round_up(x: int, m: int) -> int:
    return ((x + m - 1) // m) * m


def _vmem_limit_bytes(needed: int) -> int:
    """Generation-aware scoped-VMEM limit: ~48 MiB cap on v7x (64 MiB phys),
    ~100 MiB on v5e/v6e (128 MiB phys)."""
    try:
        kind = jax.devices()[0].device_kind.lower()
    except Exception:
        kind = ""
    cap = (48 << 20) if "v7" in kind else (100 << 20)
    return int(min(cap, max(needed + (4 << 20), 32 << 20)))


def _make_nll_kernel(class_axis: int):
    """Per-sample LDAM NLL.  class_axis=1 -> (rows, C) layout; class_axis=0 ->
    transposed (C, cols) layout with the batch on the lane axis."""

    def kernel(logits_ref, target_ref, cls_ref, ms_ref, nll_ref):
        x = logits_ref[...].astype(jnp.float32)          # native dtype -> f32
        tgt = target_ref[...]                            # int32, batch-shaped
        # One-hot mask via broadcast compare against the (1,C)/(C,1) class-id
        # vector built once in the wrapper (no per-tile full-size iota).
        mask = cls_ref[...] == tgt
        # Margin only applies at the target column: final = x - where(mask, s*m, 0).
        final = x - jnp.where(mask, ms_ref[...], 0.0)
        # Stable log-softmax picked only at the target class.
        zmax = jnp.max(final, axis=class_axis, keepdims=True)
        z = final - zmax
        lse = jnp.log(jnp.sum(jnp.exp(z), axis=class_axis, keepdims=True))
        zt = jnp.sum(jnp.where(mask, z, 0.0), axis=class_axis, keepdims=True)
        # Padded samples carry target == -1 -> contribute exactly 0.
        nll_ref[...] = jnp.where(tgt >= 0, lse - zt, 0.0)

    return kernel


def _ldam_nll_transposed(logits, target, m_s, n, c, itemsize):
    """Small-C path: (C, N) layout, batch on the lane axis. Returns nll (n,)."""
    # Per-sample VMEM bytes (x2 double-buffered): logits column, plus the
    # sublane-padded (1, TB) int32 target row and f32 output row (8x pad each).
    bytes_per_col = 2 * c * itemsize + 2 * _SUBLANE * 4 + 2 * _SUBLANE * 4
    budget_cols = max(_LANE, (_VMEM_TILE_BUDGET // bytes_per_col) // _LANE * _LANE)
    num_tiles = int(pl.cdiv(n, budget_cols))
    block_cols = _round_up(int(pl.cdiv(n, num_tiles)), _LANE)   # balanced tiles
    n_pad = block_cols * num_tiles

    logits_t = jnp.pad(logits.T, ((0, 0), (0, n_pad - n)))               # (C, Np)
    target_row = jnp.pad(target.reshape(1, n), ((0, 0), (0, n_pad - n)),
                         constant_values=-1)                              # (1, Np)
    cls_col = jnp.arange(c, dtype=jnp.int32).reshape(c, 1)                # (C, 1)
    ms_col = m_s.reshape(c, 1)                                            # (C, 1)

    vmem_needed = (2 * (c * block_cols * itemsize)
                   + 2 * (_SUBLANE * block_cols * 4) * 2
                   + c * 8)

    nll = pl.pallas_call(
        _make_nll_kernel(class_axis=0),
        out_shape=jax.ShapeDtypeStruct((1, n_pad), jnp.float32),
        grid_spec=pltpu.PrefetchScalarGridSpec(
            num_scalar_prefetch=0,
            grid=(num_tiles,),
            in_specs=[
                pl.BlockSpec((c, block_cols), lambda i: (0, i)),
                pl.BlockSpec((1, block_cols), lambda i: (0, i)),
                pl.BlockSpec((c, 1), lambda i: (0, 0)),
                pl.BlockSpec((c, 1), lambda i: (0, 0)),
            ],
            out_specs=pl.BlockSpec((1, block_cols), lambda i: (0, i)),
        ),
        compiler_params=pltpu.CompilerParams(
            dimension_semantics=("parallel",),
            vmem_limit_bytes=_vmem_limit_bytes(vmem_needed),
        ),
        cost_estimate=pl.CostEstimate(
            flops=8 * n_pad * c,
            transcendentals=n_pad * (c + 1),
            bytes_accessed=n_pad * c * itemsize + n_pad * 8 + c * 8,
        ),
    )(logits_t, target_row, cls_col, ms_col)
    return nll[0, :n]


def _ldam_nll_rowmajor(logits, target, m_s, n, c, itemsize):
    """General path: (N, C) layout, classes on the lane axis. Returns nll (n,)."""
    # Per-row VMEM bytes (x2 double-buffered): logits row + the 128-lane-padded
    # (TN, 1) int32 target and f32 output columns (512 B/row each).
    bytes_per_row = 2 * c * itemsize + 2 * _LANE * 4 + 2 * _LANE * 4
    budget_rows = max(_SUBLANE,
                      (_VMEM_TILE_BUDGET // bytes_per_row) // _SUBLANE * _SUBLANE)
    num_tiles = int(pl.cdiv(n, budget_rows))
    block_rows = _round_up(int(pl.cdiv(n, num_tiles)), _SUBLANE)  # balanced tiles
    n_pad = block_rows * num_tiles

    logits_p = jnp.pad(logits, ((0, n_pad - n), (0, 0)))                  # (Np, C)
    target_col = jnp.pad(target.reshape(n, 1), ((0, n_pad - n), (0, 0)),
                         constant_values=-1)                              # (Np, 1)
    cls_row = jnp.arange(c, dtype=jnp.int32).reshape(1, c)                # (1, C)
    ms_row = m_s.reshape(1, c)                                            # (1, C)

    vmem_needed = (2 * (block_rows * c * itemsize)
                   + 2 * (block_rows * _LANE * 4) * 2
                   + c * 8)

    nll = pl.pallas_call(
        _make_nll_kernel(class_axis=1),
        out_shape=jax.ShapeDtypeStruct((n_pad, 1), jnp.float32),
        grid_spec=pltpu.PrefetchScalarGridSpec(
            num_scalar_prefetch=0,
            grid=(num_tiles,),
            in_specs=[
                pl.BlockSpec((block_rows, c), lambda i: (i, 0)),
                pl.BlockSpec((block_rows, 1), lambda i: (i, 0)),
                pl.BlockSpec((1, c), lambda i: (0, 0)),
                pl.BlockSpec((1, c), lambda i: (0, 0)),
            ],
            out_specs=pl.BlockSpec((block_rows, 1), lambda i: (i, 0)),
        ),
        compiler_params=pltpu.CompilerParams(
            dimension_semantics=("parallel",),
            vmem_limit_bytes=_vmem_limit_bytes(vmem_needed),
        ),
        cost_estimate=pl.CostEstimate(
            flops=8 * n_pad * c,
            transcendentals=n_pad * (c + 1),
            bytes_accessed=n_pad * c * itemsize + n_pad * 8 + c * 8,
        ),
    )(logits_p, target_col, cls_row, ms_row)
    return nll[:n, 0]


def ldam_loss(logits, target, m_list, s=30.0, small_c_threshold=128):
    """LDAMLoss.forward (weight=None path).
    logits: (N, C) float32/bfloat16; target: (N,) int; m_list: (C,) float."""
    n, c = logits.shape
    itemsize = jnp.dtype(logits.dtype).itemsize
    target = jnp.asarray(target, jnp.int32)
    m_s = jnp.asarray(m_list, jnp.float32) * float(s)   # hoisted: s * m_list

    if c <= small_c_threshold:
        nll = _ldam_nll_transposed(logits, target, m_s, n, c, itemsize)
    else:
        nll = _ldam_nll_rowmajor(logits, target, m_s, n, c, itemsize)
    return jnp.sum(nll) / float(n)


def _reference_ldam(logits, target, m_list, s=30.0):
    # Pure-JAX reference mirroring the PyTorch module (weight=None path).
    n, c = logits.shape
    x = logits.astype(jnp.float32)
    onehot = jax.nn.one_hot(target, c, dtype=jnp.float32)
    batch_m = (onehot * jnp.asarray(m_list, jnp.float32)[None, :]).sum(-1, keepdims=True)
    x_m = x - batch_m * s
    final = jnp.where(onehot > 0, x_m, x)
    logp = jax.nn.log_softmax(final, axis=-1)
    return jnp.mean(-jnp.sum(onehot * logp, axis=-1))


def _make_m_list(cls_num_list, max_m=0.5):
    m = 1.0 / np.sqrt(np.sqrt(np.asarray(cls_num_list, dtype=np.float64)))
    m = m * (max_m / np.max(m))
    return jnp.asarray(m, dtype=jnp.float32)


if __name__ == "__main__":
    s = 30.0
    key = jax.random.PRNGKey(0)
    k1, k2, k3, k4, k5, k6 = jax.random.split(key, 6)

    # Deterministic "module init": cls_num_list -> m_list (as in LDAMLoss.__init__)
    num_classes = 16
    cls_num_list = np.array(
        [1000, 800, 600, 500, 400, 300, 250, 200,
         150, 120, 100, 80, 60, 40, 20, 10], dtype=np.float64)
    m_list = _make_m_list(cls_num_list)

    # --- check 1: small batch, small C -> transposed (lane-dense) path, f32 ---
    batch = 8
    logits = jax.random.normal(k1, (batch, num_classes), dtype=jnp.float32)
    target = jax.random.randint(k2, (batch,), 0, num_classes, dtype=jnp.int32)
    loss = jax.block_until_ready(ldam_loss(logits, target, m_list, s=s))
    ref = _reference_ldam(logits, target, m_list, s=s)
    assert jnp.allclose(loss, ref, rtol=1e-5, atol=1e-5), (loss, ref)

    # --- check 2: batch not a multiple of the tile -> exercises padding mask ---
    batch2 = 25
    logits2 = jax.random.normal(k3, (batch2, num_classes), dtype=jnp.float32)
    target2 = jax.random.randint(k4, (batch2,), 0, num_classes, dtype=jnp.int32)
    loss2 = jax.block_until_ready(ldam_loss(logits2, target2, m_list, s=s))
    ref2 = _reference_ldam(logits2, target2, m_list, s=s)
    assert jnp.allclose(loss2, ref2, rtol=1e-5, atol=1e-5), (loss2, ref2)

    # --- check 3: bf16 logits ingested natively, upcast in-kernel ---
    logits_bf16 = logits.astype(jnp.bfloat16)
    loss_bf16 = jax.block_until_ready(ldam_loss(logits_bf16, target, m_list, s=s))
    ref_bf16 = _reference_ldam(logits_bf16.astype(jnp.float32), target, m_list, s=s)
    assert jnp.allclose(loss_bf16, ref_bf16, rtol=1e-4, atol=1e-4), (loss_bf16, ref_bf16)

    # --- check 4: larger class count -> row-major (N, C) path ---
    num_classes3 = 192
    cls_num_list3 = np.linspace(1000.0, 10.0, num_classes3)
    m_list3 = _make_m_list(cls_num_list3)
    batch3 = 20
    logits3 = jax.random.normal(k5, (batch3, num_classes3), dtype=jnp.float32)
    target3 = jax.random.randint(k6, (batch3,), 0, num_classes3, dtype=jnp.int32)
    loss3 = jax.block_until_ready(ldam_loss(logits3, target3, m_list3, s=s))
    ref3 = _reference_ldam(logits3, target3, m_list3, s=s)
    assert jnp.allclose(loss3, ref3, rtol=1e-5, atol=1e-5), (loss3, ref3)

    print("KERNEL_OK")
</pallas_src>

<mosaic_0001>
module attributes {stable_mosaic.version = 11 : i64} {
  func.func @kernel(%arg0: i32, %arg1: memref<16x128xf32, #tpu.memory_space<vmem>>, %arg2: memref<1x128xi32, #tpu.memory_space<vmem>>, %arg3: memref<16x1xi32, #tpu.memory_space<vmem>>, %arg4: memref<16x1xf32, #tpu.memory_space<vmem>>, %arg5: memref<1x128xf32, #tpu.memory_space<vmem>>) attributes {dimension_semantics = [#tpu.dimension_semantics<parallel>], iteration_bounds = array<i64: 1>, scalar_prefetch = 0 : i64, scratch_operands = 0 : i64, tpu.core_type = #tpu.core_type<tc>, window_params = [{transform_indices = @transform_0, window_bounds = array<i64: 16, 128>}, {transform_indices = @transform_1, window_bounds = array<i64: 1, 128>}, {pipeline_mode = #tpu.pipeline_mode<synchronous>, transform_indices = @transform_2, window_bounds = array<i64: 16, 1>}, {pipeline_mode = #tpu.pipeline_mode<synchronous>, transform_indices = @transform_3, window_bounds = array<i64: 16, 1>}, {transform_indices = @transform_4, window_bounds = array<i64: 1, 128>}]} {
    %c0 = arith.constant 0 : index
    %c0_0 = arith.constant 0 : index
    %0 = vector.load %arg1[%c0, %c0_0] : memref<16x128xf32, #tpu.memory_space<vmem>>, vector<16x128xf32>
    %c0_1 = arith.constant 0 : index
    %c0_2 = arith.constant 0 : index
    %1 = vector.load %arg2[%c0_1, %c0_2] : memref<1x128xi32, #tpu.memory_space<vmem>>, vector<1x128xi32>
    %c0_3 = arith.constant 0 : index
    %c0_4 = arith.constant 0 : index
    %2 = vector.load %arg3[%c0_3, %c0_4] : memref<16x1xi32, #tpu.memory_space<vmem>>, vector<16x1xi32>
    %3 = vector.broadcast %2 : vector<16x1xi32> to vector<16x128xi32>
    %4 = vector.broadcast %1 : vector<1x128xi32> to vector<16x128xi32>
    %5 = arith.cmpi eq, %3, %4 : vector<16x128xi32>
    %c0_5 = arith.constant 0 : index
    %c0_6 = arith.constant 0 : index
    %6 = vector.load %arg4[%c0_5, %c0_6] : memref<16x1xf32, #tpu.memory_space<vmem>>, vector<16x1xf32>
    %cst = arith.constant 0.000000e+00 : f32
    %7 = vector.shape_cast %6 : vector<16x1xf32> to vector<16x1xf32>
    %8 = vector.broadcast %7 : vector<16x1xf32> to vector<16x128xf32>
    %9 = vector.broadcast %cst : f32 to vector<16x128xf32>
    %10 = arith.select %5, %8, %9 : vector<16x128xi1>, vector<16x128xf32>
    %11 = arith.subf %0, %10 : vector<16x128xf32>
    %cst_7 = arith.constant dense<0xFF800000> : vector<128xf32>
    %12 = vector.multi_reduction <maximumf>, %11, %cst_7 [0] : vector<16x128xf32> to vector<128xf32>
    %13 = vector.shape_cast %12 : vector<128xf32> to vector<1x128xf32>
    %14 = vector.broadcast %13 : vector<1x128xf32> to vector<16x128xf32>
    %15 = arith.subf %11, %14 : vector<16x128xf32>
    %16 = math.exp %15 : vector<16x128xf32>
    %cst_8 = arith.constant dense<0.000000e+00> : vector<128xf32>
    %17 = vector.multi_reduction <add>, %16, %cst_8 [0] : vector<16x128xf32> to vector<128xf32>
    %18 = vector.shape_cast %17 : vector<128xf32> to vector<1x128xf32>
    %19 = math.log %18 : vector<1x128xf32>
    %cst_9 = arith.constant 0.000000e+00 : f32
    %20 = vector.broadcast %cst_9 : f32 to vector<16x128xf32>
    %21 = arith.select %5, %15, %20 : vector<16x128xi1>, vector<16x128xf32>
    %cst_10 = arith.constant dense<0.000000e+00> : vector<128xf32>
    %22 = vector.multi_reduction <add>, %21, %cst_10 [0] : vector<16x128xf32> to vector<128xf32>
    %23 = vector.shape_cast %22 : vector<128xf32> to vector<1x128xf32>
    %c0_i32 = arith.constant 0 : i32
    %24 = vector.broadcast %c0_i32 : i32 to vector<1x128xi32>
    %25 = arith.cmpi sge, %1, %24 : vector<1x128xi32>
    %26 = arith.subf %19, %23 : vector<1x128xf32>
    %cst_11 = arith.constant 0.000000e+00 : f32
    %27 = vector.broadcast %cst_11 : f32 to vector<1x128xf32>
    %28 = arith.select %25, %26, %27 : vector<1x128xi1>, vector<1x128xf32>
    %c0_12 = arith.constant 0 : index
    %c0_13 = arith.constant 0 : index
    %29 = vector.load %arg5[%c0_12, %c0_13] : memref<1x128xf32, #tpu.memory_space<vmem>>, vector<1x128xf32>
    tpu.vector_store %arg5[%c0_12, %c0_13], %28 {strides = array<i32>} : memref<1x128xf32, #tpu.memory_space<vmem>>, vector<1x128xf32>,
    return
  }
  func.func @transform_0(%arg0: i32) -> (i32, i32) {
    %c0_i32 = arith.constant 0 : i32
    %c0_i32_0 = arith.constant 0 : i32
    return %c0_i32, %arg0 : i32, i32
  }
  func.func @transform_1(%arg0: i32) -> (i32, i32) {
    %c0_i32 = arith.constant 0 : i32
    %c0_i32_0 = arith.constant 0 : i32
    return %c0_i32, %arg0 : i32, i32
  }
  func.func @transform_2(%arg0: i32) -> (i32, i32) {
    %c0_i32 = arith.constant 0 : i32
    %c0_i32_0 = arith.constant 0 : i32
    %c0_i32_1 = arith.constant 0 : i32
    return %c0_i32, %c0_i32_0 : i32, i32
  }
  func.func @transform_3(%arg0: i32) -> (i32, i32) {
    %c0_i32 = arith.constant 0 : i32
    %c0_i32_0 = arith.constant 0 : i32
    %c0_i32_1 = arith.constant 0 : i32
    return %c0_i32, %c0_i32_0 : i32, i32
  }
  func.func @transform_4(%arg0: i32) -> (i32, i32) {
    %c0_i32 = arith.constant 0 : i32
    %c0_i32_0 = arith.constant 0 : i32
    return %c0_i32, %arg0 : i32, i32
  }
}

</mosaic_0001>

<llo_original>
// kernel: tpu_custom_call.1
$region0: #{tpu_custom_call.1}
  #allocation0 [shape = 'u32[]', space=smem, size = 0x4, offset = 0x4, fixed_abs, tag = 'smem constant byte address 0x4 - core index']
  #allocation1 [shape = 'u32[144,128]{1,0:T(1,128)}', space=vmem, size = 0x12000, scoped, tag = 'internal scratch']
  %s0 = inlined_call_operand.vmem [shape: f32[16,128], index: 0, kind: input, shape index: {}]
  %s1 = inlined_call_operand.vmem [shape: s32[1,128], index: 1, kind: input, shape index: {}]
  %s2 = inlined_call_operand.vmem [shape: s32[16,1], index: 2, kind: input, shape index: {}]
  %s3 = inlined_call_operand.vmem [shape: f32[16,1], index: 3, kind: input, shape index: {}]
  %s4 = inlined_call_operand.hbm [shape: f32[1,128], index: 4, kind: output, shape index: {}]
  %s5 = sld [smem:[#allocation0]]
  $region26: #{tpu_custom_call.1} parent=0
    _
  %s7 = ssub.s32 1, %s5
  %s8 = scalar_select 0, %s7, %s5
  $region1: #{tpu_custom_call.1} parent=0
    #allocation2 [shape = 'u8[512]{0}', space=vmem, size = 0x400, scoped, tag = 'output window, operand 0, single buffered']
    #allocation3 [shape = 's32[1]{0}', space=sflag, size = 0x4, scoped, tag = 'scoped memory for tpu_custom_call.1']
    %9 = vsyncpa [#allocation3], 0
    // Predicated region
    $region2: #{tpu_custom_call.1} parent=1 // pred_check
      _
    $region3: #{tpu_custom_call.1} parent=1 // pred_check_branch
      %11 = sbr.rel (0) target = $region5
    $region4: #{tpu_custom_call.1} parent=1 // pred_region
      _
    $region5: #{tpu_custom_call.1} parent=1 // pred_fallthru
      _
    // Predicated region
    $region6: #{tpu_custom_call.1} parent=1 // pred_check
      _
    $region7: #{tpu_custom_call.1} parent=1 // pred_check_branch
      %13 = sbr.rel (0) target = $region9
    $region8: #{tpu_custom_call.1} parent=1 // pred_region
      _
    $region9: #{tpu_custom_call.1} parent=1 // pred_fallthru
      _
    // Predicated region
    $region10: #{tpu_custom_call.1} parent=1 // pred_check
      _
    $region11: #{tpu_custom_call.1} parent=1 // pred_check_branch
      %15 = sbr.rel (0) target = $region13
    $region12: #{tpu_custom_call.1} parent=1 // pred_region
      _
    $region13: #{tpu_custom_call.1} parent=1 // pred_fallthru
      _
    // Predicated region
    $region14: #{tpu_custom_call.1} parent=1 // pred_check
      _
    $region15: #{tpu_custom_call.1} parent=1 // pred_check_branch
      %17 = sbr.rel (0) target = $region17
    $region16: #{tpu_custom_call.1} parent=1 // pred_region
      _
    $region17: #{tpu_custom_call.1} parent=1 // pred_fallthru
      _
    %v18 = vld [vmem:[%s0] sm:$0xff]
    %v19 = vld [vmem:[%s0 + $0x8] sm:$0xff]
    %v20 = vld [vmem:[%s1] sm:$0x1]
    %v21 = vld [vmem:[%s2] sm:$0xff]
    %v22 = vld [vmem:[%s2 + $0x8] sm:$0xff]
    %23 = vset.pattern.permute.xlu0 0
    %24 = vperm.xlu0 %23, %v21
    %v25 = vpop.permute.xlu0 %24
    %26 = vset.pattern.permute.xlu0 0
    %27 = vperm.xlu0 %26, %v22
    %v28 = vpop.permute.xlu0 %27
    %v29 = vlaneseq
    %v30 = vshrl.u32 %v29, 7
    %v31 = vsub.s32 0, %v30
    %v32 = vrot.slane %v20, %v31
    %vm33 = vcmp.eq.s32.totalorder %v25, %v32
    %vm34 = vcmp.eq.s32.totalorder %v28, %v32
    %v35 = vld [vmem:[%s3] sm:$0xff]
    %v36 = vld [vmem:[%s3 + $0x8] sm:$0xff]
    %38 = vset.pattern.permute.xlu0 0
    %39 = vperm.xlu0 %38, %v35
    %v40 = vpop.permute.xlu0 %39
    %43 = vset.pattern.permute.xlu0 0
    %44 = vperm.xlu0 %43, %v36
    %v45 = vpop.permute.xlu0 %44
    %v47 = vsel %vm33, %v40, 0.0
    %v48 = vsel %vm34, %v45, 0.0
    %v49 = vsub.f32 %v18, %v47
    %v50 = vsub.f32 %v19, %v48
    %v51 = vmax.f32 %v49, %v50
    %v52 = vrot.slane %v51, 4
    %v53 = vmax.f32 %v51, %v52
    %v54 = vrot.slane %v53, 2
    %v55 = vmax.f32 %v53, %v54
    %v56 = vrot.slane %v55, 1
    %v57 = vmax.f32 %v55, %v56
    %v58 = vsub.f32 %v49, %v57
    %v59 = vsub.f32 %v50, %v57
    %v60 = vmul.f32 %v58, 1.442695
    %v61 = vpow.pop %v60
    %v62 = vmul.f32 %v59, 1.442695
    %v63 = vpow.pop %v62
    %v64 = vadd.f32 %v61, %v63
    %v65 = vrot.slane %v64, 4
    %v66 = vadd.f32 %v64, %v65
    %v67 = vrot.slane %v66, 2
    %v68 = vadd.f32 %v66, %v67
    %v69 = vrot.slane %v68, 1
    %v70 = vadd.f32 %v68, %v69
    %v71 = vlog2.pop %v70
    %v72 = vmul.f32 %v71, 0.6931472
    %v73 = vsel %vm33, %v58, 0.0
    %v74 = vsel %vm34, %v59, 0.0
    %v75 = vadd.f32 %v73, %v74
    %v76 = vrot.slane %v75, 4
    %v77 = vadd.f32 %v75, %v76
    %v78 = vrot.slane %v77, 2
    %v79 = vadd.f32 %v77, %v78
    %v80 = vrot.slane %v79, 1
    %v81 = vadd.f32 %v79, %v80
    %vm82 = vcmp.ge.s32.totalorder %v20, 0
    %v83 = vsub.f32 %v72, %v81
    %v84 = vsel %vm82, %v83, 0.0
    %85 = vst [vmem:[#allocation2] sm:$0x1] %v84
    // Predicated region
    $region18: #{tpu_custom_call.1} parent=1 // pred_check
      _
    $region19: #{tpu_custom_call.1} parent=1 // pred_check_branch
      %87 = sbr.rel (0) target = $region21
    $region20: #{tpu_custom_call.1} parent=1 // pred_region
      %s89 = ssub.s32 16, 16
      %90 = vsyncadd [#allocation3], %s89
      %s92 = sshll.u32 [#allocation2], 4
      %s93 = int_to_ptr.vmem [resolvable:$true] %s92
      %95 = dma.vmem_to_hbm [thread:$0]  %s93, 16, %s4, [#allocation3]
    $region21: #{tpu_custom_call.1} parent=1 // pred_fallthru
      _
    // Predicated region
    $region22: #{tpu_custom_call.1} parent=1 // pred_check
      _
    $region23: #{tpu_custom_call.1} parent=1 // pred_check_branch
      %97 = sbr.rel (0) target = $region25
    $region24: #{tpu_custom_call.1} parent=1 // pred_region
      %98 = dma.done [#allocation3], 16
    $region25: #{tpu_custom_call.1} parent=1 // pred_fallthru
      _
    %99 = vsyncpa [#allocation3], 1

</llo_original>
